<compile_context>
chip_gen: v5e
topology: v5e:2x2
jax: 0.10.0
libtpu: 0.0.40
codegen_flags: <defaults>
</compile_context>

<pallas_src>
from functools import partial

import jax
import jax.numpy as jnp
from jax.experimental import pallas as pl
from jax.experimental.pallas import tpu as pltpu


def _make_ranker_kernel(ks, B, N, TB, tiles_per_part, num_tiles):
    """Kernel closure. All arguments are static Python values."""
    ks = tuple(int(k) for k in ks)
    valid_length = N - 1
    M = 2 * len(ks) + 2
    inv_valid = 1.0 / float(valid_length)

    def kernel(scores_ref, out_ref):
        i = pl.program_id(0)          # partial-sum "part" (parallel axis)
        j = pl.program_id(1)          # batch-tile within part (arbitrary axis)

        @pl.when(j == 0)
        def _init():
            out_ref[...] = jnp.zeros_like(out_ref)

        # Linear (unclamped) tile index -> global row ids for masking padded /
        # duplicated (clamped) tiles out of the accumulated sums.
        t = i * tiles_per_part + j
        row0 = t * TB
        row_ids = row0 + jax.lax.broadcasted_iota(jnp.int32, (TB, 1), 0)
        valid = (row_ids < B).astype(jnp.float32)                    # (TB, 1)

        s = scores_ref[...]                                          # (TB, N)
        predicts = s[:, 0:1]                                         # (TB, 1)
        rank = jnp.sum((predicts < s).astype(jnp.float32),
                       axis=-1, keepdims=True)                       # (TB, 1)

        # Per-row metric columns (all f32, shape (TB, 1)).
        inv_log = pl.reciprocal(jnp.log2(rank + 2.0), approx=True)   # EUP
        cols = []
        for k in ks:
            ind = (rank < float(k)).astype(jnp.float32)
            cols.append(inv_log * ind)                               # NDCG@k
            cols.append(ind)                                         # HR@k
        cols.append(pl.reciprocal(rank + 1.0, approx=True))          # MRR
        cols.append(1.0 - rank * inv_valid)                          # AUC-like

        # Pack columns into one (TB, M) block via lane-index select, then do a
        # SINGLE cross-sublane reduction instead of M serialized jnp.mean's.
        col_idx = jax.lax.broadcasted_iota(jnp.int32, (TB, M), 1)
        vals = jnp.zeros((TB, M), jnp.float32)
        for idx, c in enumerate(cols):
            vals = jnp.where(col_idx == idx, c, vals)
        vals = vals * valid                                          # mask pads

        partial_sums = jnp.sum(vals, axis=0, keepdims=True)          # (1, M)
        out_ref[...] += partial_sums.reshape(out_ref.shape)

    return kernel


def _pick_tile_rows(B, N, itemsize):
    """Batch-tile height: ~4 MiB per buffer (double-buffered) — safe on the
    v5e 16 MiB scoped-VMEM default and well under v7x's 64 MiB VMEM."""
    budget = 4 * 1024 * 1024
    tb = max(8, min(1024, budget // max(1, N * itemsize)))
    tb = (tb // 8) * 8
    if B <= tb:
        return B                      # full-batch block (full-dim block is legal)
    return tb


@partial(jax.jit, static_argnames=("ks", "tile_rows"))
def sample_ranker_metrics(scores, *, ks, tile_rows=None):
    """Device-side metrics vector (length 2*len(ks)+2), order:
    [NDCG@k, HR@k]*len(ks), MRR, AUC-like. Stays on device (no host syncs)."""
    scores = jnp.asarray(scores)
    if not jnp.issubdtype(scores.dtype, jnp.floating):
        scores = scores.astype(jnp.float32)
    B, N = scores.shape
    if N < 2:
        raise ValueError("SampleRanker needs at least one negative (N >= 2).")

    TB = tile_rows if tile_rows is not None else _pick_tile_rows(
        B, N, scores.dtype.itemsize)
    TB = min(int(TB), B)
    if TB < B and TB % 8 != 0:        # partial blocks must keep sublane multiple
        TB = max(8, (TB // 8) * 8)

    num_tiles = pl.cdiv(B, TB)
    # Leading "parallel" axis -> per-part partial sums (lets v7x's 2 TCs split
    # the batch); on single-TC chips it is just a cheap outer loop of 2.
    num_parts = 2 if num_tiles > 1 else 1
    tiles_per_part = pl.cdiv(num_tiles, num_parts)
    M = 2 * len(ks) + 2

    in_index_map = lambda i, j: (
        jnp.minimum(i * tiles_per_part + j, num_tiles - 1), 0)

    partials = pl.pallas_call(
        _make_ranker_kernel(ks, B, N, TB, tiles_per_part, num_tiles),
        out_shape=jax.ShapeDtypeStruct((num_parts, 1, M), jnp.float32),
        grid_spec=pltpu.PrefetchScalarGridSpec(
            num_scalar_prefetch=0,
            grid=(num_parts, tiles_per_part),
            in_specs=[pl.BlockSpec((TB, N), in_index_map)],
            out_specs=pl.BlockSpec((1, 1, M), lambda i, j: (i, 0, 0)),
        ),
        compiler_params=pltpu.CompilerParams(
            dimension_semantics=("parallel", "arbitrary")),
    )(scores)

    sums = jnp.sum(partials.reshape(num_parts, M), axis=0)
    return sums / jnp.float32(B)


def sample_ranker_forward(scores, ks, tile_rows=None):
    """API-parity wrapper matching the PyTorch module: Python list + [0].
    Does a SINGLE device->host transfer (no per-metric .item() syncs)."""
    metrics = sample_ranker_metrics(scores, ks=tuple(ks), tile_rows=tile_rows)
    return list(map(float, jax.device_get(metrics))) + [0]


def sample_ranker_reference(scores, ks):
    """Pure-JAX reference (exact divisions) for verification."""
    scores = jnp.asarray(scores, jnp.float32)
    predicts = scores[:, 0:1]
    valid_length = scores.shape[-1] - 1
    rank = jnp.sum((predicts < scores).astype(jnp.float32), axis=-1)
    cols = []
    for k in ks:
        ind = (rank < k).astype(jnp.float32)
        cols.append(jnp.mean((1.0 / jnp.log2(rank + 2.0)) * ind))
        cols.append(jnp.mean(ind))
    cols.append(jnp.mean(1.0 / (rank + 1.0)))
    cols.append(jnp.mean(1.0 - rank / valid_length))
    return jnp.stack(cols)


if __name__ == "__main__":
    key = jax.random.PRNGKey(0)
    ks = (1, 5, 10)
    # Tolerance covers the EUP approximate reciprocals used for NDCG / MRR.
    TOL = 2e-3

    # Case 1: small shape, single full-batch tile.
    k1, k2 = jax.random.split(key)
    scores_small = jax.random.normal(k1, (8, 16), dtype=jnp.float32)
    got1 = sample_ranker_metrics(scores_small, ks=ks)
    jax.block_until_ready(got1)
    want1 = sample_ranker_reference(scores_small, ks)
    assert float(jnp.max(jnp.abs(got1 - want1))) < TOL, (got1, want1)

    # Case 2: multi-tile path (partial last tile + two partial-sum parts).
    scores_big = jax.random.normal(k2, (100, 64), dtype=jnp.float32)
    got2 = sample_ranker_metrics(scores_big, ks=ks, tile_rows=16)
    jax.block_until_ready(got2)
    want2 = sample_ranker_reference(scores_big, ks)
    assert float(jnp.max(jnp.abs(got2 - want2))) < TOL, (got2, want2)

    # API-parity wrapper (single host transfer, trailing 0 like the module).
    res = sample_ranker_forward(scores_small, ks)
    assert len(res) == 2 * len(ks) + 3 and res[-1] == 0

    print("KERNEL_OK")
</pallas_src>

<mosaic_0001>
module attributes {stable_mosaic.version = 11 : i64} {
  func.func @kernel(%arg0: i32, %arg1: i32, %arg2: memref<8x16xf32, #tpu.memory_space<vmem>>, %arg3: memref<1x1x8xf32, #tpu.memory_space<vmem>>) attributes {dimension_semantics = [#tpu.dimension_semantics<parallel>, #tpu.dimension_semantics<arbitrary>], iteration_bounds = array<i64: 1, 1>, scalar_prefetch = 0 : i64, scratch_operands = 0 : i64, tpu.core_type = #tpu.core_type<tc>, window_params = [{transform_indices = @transform_0, window_bounds = array<i64: 8, 16>}, {transform_indices = @transform_1, window_bounds = array<i64: 1, 1, 8>}]} {
    %c0_i32 = arith.constant 0 : i32
    %0 = arith.cmpi eq, %arg1, %c0_i32 : i32
    %1 = arith.extui %0 : i1 to i32
    %c0_i32_0 = arith.constant 0 : i32
    %2 = arith.cmpi ne, %1, %c0_i32_0 : i32
    scf.if %2 {
      %cst_21 = arith.constant 0.000000e+00 : f32
      %100 = vector.broadcast %cst_21 : f32 to vector<1x1x8xf32>
      %c0_22 = arith.constant 0 : index
      %c0_23 = arith.constant 0 : index
      %c0_24 = arith.constant 0 : index
      %101 = vector.load %arg3[%c0_22, %c0_23, %c0_24] : memref<1x1x8xf32, #tpu.memory_space<vmem>>, vector<1x1x8xf32>
      tpu.vector_store %arg3[%c0_22, %c0_23, %c0_24], %100 {strides = array<i32>} : memref<1x1x8xf32, #tpu.memory_space<vmem>>, vector<1x1x8xf32>,
    } else {
    }
    %c1_i32 = arith.constant 1 : i32
    %3 = arith.muli %arg0, %c1_i32 : i32
    %4 = arith.addi %3, %arg1 : i32
    %c8_i32 = arith.constant 8 : i32
    %5 = arith.muli %4, %c8_i32 : i32
    %6 = tpu.iota {dimensions = array<i32: 0>} : vector<8x1xi32>
    %7 = vector.broadcast %5 : i32 to vector<8x1xi32>
    %8 = arith.addi %7, %6 : vector<8x1xi32>
    %c8_i32_1 = arith.constant 8 : i32
    %9 = vector.broadcast %c8_i32_1 : i32 to vector<8x1xi32>
    %10 = arith.cmpi slt, %8, %9 : vector<8x1xi32>
    %11 = arith.extui %10 : vector<8x1xi1> to vector<8x1xi32>
    %12 = arith.sitofp %11 : vector<8x1xi32> to vector<8x1xf32>
    %c0 = arith.constant 0 : index
    %c0_2 = arith.constant 0 : index
    %13 = vector.load %arg2[%c0, %c0_2] : memref<8x16xf32, #tpu.memory_space<vmem>>, vector<8x16xf32>
    %14 = vector.extract_strided_slice %13 {offsets = [0, 0], sizes = [8, 1], strides = [1, 1]} : vector<8x16xf32> to vector<8x1xf32>
    %15 = vector.broadcast %14 : vector<8x1xf32> to vector<8x16xf32>
    %16 = arith.cmpf olt, %15, %13 : vector<8x16xf32>
    %17 = arith.extui %16 : vector<8x16xi1> to vector<8x16xi32>
    %18 = arith.sitofp %17 : vector<8x16xi32> to vector<8x16xf32>
    %cst = arith.constant dense<0.000000e+00> : vector<8xf32>
    %19 = vector.multi_reduction <add>, %18, %cst [1] : vector<8x16xf32> to vector<8xf32>
    %20 = vector.shape_cast %19 : vector<8xf32> to vector<8x1xf32>
    %cst_3 = arith.constant 2.000000e+00 : f32
    %21 = vector.broadcast %cst_3 : f32 to vector<8x1xf32>
    %22 = arith.addf %20, %21 : vector<8x1xf32>
    %23 = math.log %22 : vector<8x1xf32>
    %cst_4 = arith.constant 2.000000e+00 : f32
    %24 = math.log %cst_4 : f32
    %25 = vector.broadcast %24 : f32 to vector<8x1xf32>
    %26 = arith.divf %23, %25 : vector<8x1xf32>
    %27 = tpu.reciprocal %26 {approx = true} : vector<8x1xf32> -> vector<8x1xf32>
    %cst_5 = arith.constant 1.000000e+00 : f32
    %28 = vector.broadcast %cst_5 : f32 to vector<8x1xf32>
    %29 = arith.cmpf olt, %20, %28 : vector<8x1xf32>
    %30 = arith.extui %29 : vector<8x1xi1> to vector<8x1xi32>
    %31 = arith.sitofp %30 : vector<8x1xi32> to vector<8x1xf32>
    %32 = arith.mulf %27, %31 : vector<8x1xf32>
    %cst_6 = arith.constant 5.000000e+00 : f32
    %33 = vector.broadcast %cst_6 : f32 to vector<8x1xf32>
    %34 = arith.cmpf olt, %20, %33 : vector<8x1xf32>
    %35 = arith.extui %34 : vector<8x1xi1> to vector<8x1xi32>
    %36 = arith.sitofp %35 : vector<8x1xi32> to vector<8x1xf32>
    %37 = arith.mulf %27, %36 : vector<8x1xf32>
    %cst_7 = arith.constant 1.000000e+01 : f32
    %38 = vector.broadcast %cst_7 : f32 to vector<8x1xf32>
    %39 = arith.cmpf olt, %20, %38 : vector<8x1xf32>
    %40 = arith.extui %39 : vector<8x1xi1> to vector<8x1xi32>
    %41 = arith.sitofp %40 : vector<8x1xi32> to vector<8x1xf32>
    %42 = arith.mulf %27, %41 : vector<8x1xf32>
    %cst_8 = arith.constant 1.000000e+00 : f32
    %43 = vector.broadcast %cst_8 : f32 to vector<8x1xf32>
    %44 = arith.addf %20, %43 : vector<8x1xf32>
    %45 = tpu.reciprocal %44 {approx = true} : vector<8x1xf32> -> vector<8x1xf32>
    %cst_9 = arith.constant 0.0666666701 : f32
    %46 = vector.broadcast %cst_9 : f32 to vector<8x1xf32>
    %47 = arith.mulf %20, %46 : vector<8x1xf32>
    %cst_10 = arith.constant 1.000000e+00 : f32
    %48 = vector.broadcast %cst_10 : f32 to vector<8x1xf32>
    %49 = arith.subf %48, %47 : vector<8x1xf32>
    %50 = tpu.iota {dimensions = array<i32: 1>} : vector<8x8xi32>
    %cst_11 = arith.constant 0.000000e+00 : f32
    %51 = vector.broadcast %cst_11 : f32 to vector<8x8xf32>
    %c0_i32_12 = arith.constant 0 : i32
    %52 = vector.broadcast %c0_i32_12 : i32 to vector<8x8xi32>
    %53 = arith.cmpi eq, %50, %52 : vector<8x8xi32>
    %54 = vector.shape_cast %32 : vector<8x1xf32> to vector<8x1xf32>
    %55 = vector.broadcast %54 : vector<8x1xf32> to vector<8x8xf32>
    %56 = arith.select %53, %55, %51 : vector<8x8xi1>, vector<8x8xf32>
    %c1_i32_13 = arith.constant 1 : i32
    %57 = vector.broadcast %c1_i32_13 : i32 to vector<8x8xi32>
    %58 = arith.cmpi eq, %50, %57 : vector<8x8xi32>
    %59 = vector.shape_cast %31 : vector<8x1xf32> to vector<8x1xf32>
    %60 = vector.broadcast %59 : vector<8x1xf32> to vector<8x8xf32>
    %61 = arith.select %58, %60, %56 : vector<8x8xi1>, vector<8x8xf32>
    %c2_i32 = arith.constant 2 : i32
    %62 = vector.broadcast %c2_i32 : i32 to vector<8x8xi32>
    %63 = arith.cmpi eq, %50, %62 : vector<8x8xi32>
    %64 = vector.shape_cast %37 : vector<8x1xf32> to vector<8x1xf32>
    %65 = vector.broadcast %64 : vector<8x1xf32> to vector<8x8xf32>
    %66 = arith.select %63, %65, %61 : vector<8x8xi1>, vector<8x8xf32>
    %c3_i32 = arith.constant 3 : i32
    %67 = vector.broadcast %c3_i32 : i32 to vector<8x8xi32>
    %68 = arith.cmpi eq, %50, %67 : vector<8x8xi32>
    %69 = vector.shape_cast %36 : vector<8x1xf32> to vector<8x1xf32>
    %70 = vector.broadcast %69 : vector<8x1xf32> to vector<8x8xf32>
    %71 = arith.select %68, %70, %66 : vector<8x8xi1>, vector<8x8xf32>
    %c4_i32 = arith.constant 4 : i32
    %72 = vector.broadcast %c4_i32 : i32 to vector<8x8xi32>
    %73 = arith.cmpi eq, %50, %72 : vector<8x8xi32>
    %74 = vector.shape_cast %42 : vector<8x1xf32> to vector<8x1xf32>
    %75 = vector.broadcast %74 : vector<8x1xf32> to vector<8x8xf32>
    %76 = arith.select %73, %75, %71 : vector<8x8xi1>, vector<8x8xf32>
    %c5_i32 = arith.constant 5 : i32
    %77 = vector.broadcast %c5_i32 : i32 to vector<8x8xi32>
    %78 = arith.cmpi eq, %50, %77 : vector<8x8xi32>
    %79 = vector.shape_cast %41 : vector<8x1xf32> to vector<8x1xf32>
    %80 = vector.broadcast %79 : vector<8x1xf32> to vector<8x8xf32>
    %81 = arith.select %78, %80, %76 : vector<8x8xi1>, vector<8x8xf32>
    %c6_i32 = arith.constant 6 : i32
    %82 = vector.broadcast %c6_i32 : i32 to vector<8x8xi32>
    %83 = arith.cmpi eq, %50, %82 : vector<8x8xi32>
    %84 = vector.shape_cast %45 : vector<8x1xf32> to vector<8x1xf32>
    %85 = vector.broadcast %84 : vector<8x1xf32> to vector<8x8xf32>
    %86 = arith.select %83, %85, %81 : vector<8x8xi1>, vector<8x8xf32>
    %c7_i32 = arith.constant 7 : i32
    %87 = vector.broadcast %c7_i32 : i32 to vector<8x8xi32>
    %88 = arith.cmpi eq, %50, %87 : vector<8x8xi32>
    %89 = vector.shape_cast %49 : vector<8x1xf32> to vector<8x1xf32>
    %90 = vector.broadcast %89 : vector<8x1xf32> to vector<8x8xf32>
    %91 = arith.select %88, %90, %86 : vector<8x8xi1>, vector<8x8xf32>
    %92 = vector.broadcast %12 : vector<8x1xf32> to vector<8x8xf32>
    %93 = arith.mulf %91, %92 : vector<8x8xf32>
    %cst_14 = arith.constant dense<0.000000e+00> : vector<8xf32>
    %94 = vector.multi_reduction <add>, %93, %cst_14 [0] : vector<8x8xf32> to vector<8xf32>
    %95 = vector.shape_cast %94 : vector<8xf32> to vector<1x8xf32>
    %c0_15 = arith.constant 0 : index
    %c0_16 = arith.constant 0 : index
    %c0_17 = arith.constant 0 : index
    %96 = vector.load %arg3[%c0_15, %c0_16, %c0_17] : memref<1x1x8xf32, #tpu.memory_space<vmem>>, vector<1x1x8xf32>
    %97 = vector.shape_cast %95 : vector<1x8xf32> to vector<1x1x8xf32>
    %98 = arith.addf %96, %97 : vector<1x1x8xf32>
    %c0_18 = arith.constant 0 : index
    %c0_19 = arith.constant 0 : index
    %c0_20 = arith.constant 0 : index
    %99 = vector.load %arg3[%c0_18, %c0_19, %c0_20] : memref<1x1x8xf32, #tpu.memory_space<vmem>>, vector<1x1x8xf32>
    tpu.vector_store %arg3[%c0_18, %c0_19, %c0_20], %98 {strides = array<i32>} : memref<1x1x8xf32, #tpu.memory_space<vmem>>, vector<1x1x8xf32>,
    return
  }
  func.func @transform_0(%arg0: i32, %arg1: i32) -> (i32, i32) {
    %c1_i32 = arith.constant 1 : i32
    %0 = arith.muli %arg0, %c1_i32 : i32
    %1 = arith.addi %0, %arg1 : i32
    %c0_i32 = arith.constant 0 : i32
    %2 = arith.minsi %1, %c0_i32 : i32
    %c0_i32_0 = arith.constant 0 : i32
    %c0_i32_1 = arith.constant 0 : i32
    return %2, %c0_i32_0 : i32, i32
  }
  func.func @transform_1(%arg0: i32, %arg1: i32) -> (i32, i32, i32) {
    %c0_i32 = arith.constant 0 : i32
    %c0_i32_0 = arith.constant 0 : i32
    %c0_i32_1 = arith.constant 0 : i32
    return %arg0, %c0_i32, %c0_i32_0 : i32, i32, i32
  }
}

</mosaic_0001>

<llo_original>
// kernel: sample_ranker_metrics.1
$region0: #{sample_ranker_metrics.1}
  #allocation0 [shape = 'u32[]', space=smem, size = 0x4, offset = 0x4, fixed_abs, tag = 'smem constant byte address 0x4 - core index']
  #allocation1 [shape = 'u32[72,128]{1,0:T(1,128)}', space=vmem, size = 0x9000, scoped, tag = 'internal scratch']
  %s0 = inlined_call_operand.hbm [shape: f32[8,16], index: 0, kind: input, shape index: {}]
  %s1 = inlined_call_operand.vmem [shape: f32[1,1,8], index: 1, kind: output, shape index: {}]
  %s2 = sld [smem:[#allocation0]]
  $region22: #{sample_ranker_metrics.1} parent=0
    _
  %s4 = ssub.s32 1, %s2
  %s5 = scalar_select 0, %s4, %s2
  $region1: #{sample_ranker_metrics.1} parent=0
    #allocation2 [shape = 'u8[4096]{0}', space=vmem, size = 0x1000, scoped, tag = 'input window, operand 0, single buffered']
    #allocation3 [shape = 's32[1]{0}', space=sflag, size = 0x4, scoped, tag = 'scoped memory for sample_ranker_metrics.1']
    %6 = vsyncpa [#allocation3], 0
    // Predicated region
    $region2: #{sample_ranker_metrics.1} parent=1 // pred_check
      _
    $region3: #{sample_ranker_metrics.1} parent=1 // pred_check_branch
      %8 = sbr.rel (0) target = $region5
    $region4: #{sample_ranker_metrics.1} parent=1 // pred_region
      %s9 = sadd.s32 0, 0
      %p10 = scmp.lt.s32.totalorder %s9, 0
      %s11 = scalar_select %p10, %s9, 0
      %13 = vsyncadd [#allocation3], 0
      %s14 = smul.addr %s11, 8
      %s15 = scalar_lea.hbm %s0, %s14
      %s17 = sshll.u32 %s15, 4
      %s18 = int_to_ptr.hbm [resolvable:$true] %s17
      %s19 = sshll.u32 [#allocation2], 4
      %s20 = int_to_ptr.vmem [resolvable:$true] %s19
      %22 = dma.hbm_to_vmem [thread:$0]  %s18, 128, %s20, [#allocation3]
    $region5: #{sample_ranker_metrics.1} parent=1 // pred_fallthru
      _
    // Predicated region
    $region6: #{sample_ranker_metrics.1} parent=1 // pred_check
      _
    $region7: #{sample_ranker_metrics.1} parent=1 // pred_check_branch
      %24 = sbr.rel (0) target = $region9
    $region8: #{sample_ranker_metrics.1} parent=1 // pred_region
      %26 = dma.done [#allocation3], 128
    $region9: #{sample_ranker_metrics.1} parent=1 // pred_fallthru
      _
    %s27 = sadd.s32 0, 0
    %p28 = scmp.lt.s32.totalorder %s27, 0
    %s29 = scalar_select %p28, %s27, 0
    %p30 = scmp.eq.s32.totalorder 0, 0
    // Predicated region
    $region10: #{sample_ranker_metrics.1} parent=1 // pred_check
      %p31 = pneg %p30
    $region11: #{sample_ranker_metrics.1} parent=1 // pred_check_branch
      %33 = sbr.rel (%p31) target = $region13
    $region12: #{sample_ranker_metrics.1} parent=1 // pred_region
      %vm34 = vcmask 57344
      %35 = vst.msk [vmem:[%s1] sm:$0x1] %vm34, 0.0
    $region13: #{sample_ranker_metrics.1} parent=1 // pred_fallthru
      _
    %s36 = sadd.s32 0, 0
    %s37 = smul.u32 %s36, 8
    %v38 = vlaneseq
    %v39 = vshrl.u32 %v38, 7
    %v40 = vstv %s37
    %v41 = vadd.s32 %v40, %v39
    %vm42 = vcmp.lt.s32.totalorder %v41, 8
    %v43 = vsel %vm42, 1, 0
    %v44 = vcvt.s32.f32 %v43
    %v45 = vld [vmem:[#allocation2] sm:$0xff]
    %47 = vset.pattern.permute.xlu0 0
    %48 = vperm.xlu0 %47, %v45
    %v49 = vpop.permute.xlu0 %48
    %vm51 = vcmp.lt.f32.partialorder %v49, %v45
    %v52 = vsel %vm51, 1, 0
    %v53 = vcvt.s32.f32 %v52
    %vm54 = vcmask 130048
    %v55 = vsel %vm54, %v53, 0.0
    %56 = vadd.xlane.f32.xlu0 %v55
    %v57 = vpop.xlane.xlu0 %56
    %v58 = vadd.f32 %v57, 2.0
    %v59 = vlog2.pop %v58
    %v60 = vmul.f32 %v59, 0.6931472
    %v61 = vrcp.pop 0.6931472
    %v62 = vmul.f32 0.6931472, %v61
    %v63 = vsub.f32 1.0, %v62
    %v64 = vmul.f32 %v61, %v63
    %v65 = vadd.f32 %v61, %v64
    %vm66 = vweird.f32 %v61
    %v67 = vsel %vm66, %v61, %v65
    %v68 = vmul.f32 %v60, %v67
    %v69 = vrcp.pop %v68
    %vm70 = vcmp.lt.f32.partialorder %v57, 1.0
    %v71 = vsel %vm70, 1, 0
    %v72 = vcvt.s32.f32 %v71
    %v73 = vmul.f32 %v69, %v72
    %vm74 = vcmp.lt.f32.partialorder %v57, 5.0
    %v75 = vsel %vm74, 1, 0
    %v76 = vcvt.s32.f32 %v75
    %v77 = vmul.f32 %v69, %v76
    %vm78 = vcmp.lt.f32.partialorder %v57, 10.0
    %v79 = vsel %vm78, 1, 0
    %v80 = vcvt.s32.f32 %v79
    %v81 = vmul.f32 %v69, %v80
    %v82 = vadd.f32 %v57, 1.0
    %v83 = vrcp.pop %v82
    %v84 = vmul.f32 %v57, 0.06666667
    %v85 = vsub.f32 1.0, %v84
    %v86 = vlaneseq
    %v87 = vand.u32 %v86, 127
    %vm88 = vcmp.eq.s32.totalorder %v87, 0
    %v89 = vsel %vm88, %v73, 0.0
    %vm90 = vcmp.eq.s32.totalorder %v87, 1
    %v91 = vsel %vm90, %v72, %v89
    %vm92 = vcmp.eq.s32.totalorder %v87, 2
    %v93 = vsel %vm92, %v77, %v91
    %vm94 = vcmp.eq.s32.totalorder %v87, 3
    %v95 = vsel %vm94, %v76, %v93
    %vm96 = vcmp.eq.s32.totalorder %v87, 4
    %v97 = vsel %vm96, %v81, %v95
    %vm98 = vcmp.eq.s32.totalorder %v87, 5
    %v99 = vsel %vm98, %v80, %v97
    %vm100 = vcmp.eq.s32.totalorder %v87, 6
    %v101 = vsel %vm100, %v83, %v99
    %vm102 = vcmp.eq.s32.totalorder %v87, 7
    %v103 = vsel %vm102, %v85, %v101
    %v104 = vmul.f32 %v103, %v44
    %vm105 = vcmask 64512
    %v106 = vsel %vm105, %v104, 0.0
    %v107 = vrot.slane %v106, 4
    %v108 = vadd.f32 %v106, %v107
    %v109 = vrot.slane %v108, 2
    %v110 = vadd.f32 %v108, %v109
    %v111 = vrot.slane %v110, 1
    %v112 = vadd.f32 %v110, %v111
    %v113 = vld [vmem:[%s1] sm:$0x1]
    %v114 = vadd.f32 %v113, %v112
    %vm115 = vcmask 57344
    %116 = vst.msk [vmem:[%s1] sm:$0x1] %vm115, %v114
    // Predicated region
    $region14: #{sample_ranker_metrics.1} parent=1 // pred_check
      _
    $region15: #{sample_ranker_metrics.1} parent=1 // pred_check_branch
      %118 = sbr.rel (0) target = $region17
    $region16: #{sample_ranker_metrics.1} parent=1 // pred_region
      _
    $region17: #{sample_ranker_metrics.1} parent=1 // pred_fallthru
      _
    // Predicated region
    $region18: #{sample_ranker_metrics.1} parent=1 // pred_check
      _
    $region19: #{sample_ranker_metrics.1} parent=1 // pred_check_branch
      %120 = sbr.rel (0) target = $region21
    $region20: #{sample_ranker_metrics.1} parent=1 // pred_region
      _
    $region21: #{sample_ranker_metrics.1} parent=1 // pred_fallthru
      _
    %121 = vsyncpa [#allocation3], 1

</llo_original>
